<compile_context>
chip_gen: v7x
topology: tpu7x:2x2x1
jax: 0.10.0
libtpu: 0.0.40
codegen_flags: <defaults>
</compile_context>

<pallas_src>
import functools

import jax
import jax.numpy as jnp
from jax.experimental import pallas as pl
from jax.experimental.pallas import tpu as pltpu


def _perc_l1_kernel(d_ref, w_ref, o_ref, *, in_vmem_im2col, h, w, cin,
                    tile_h, cout_blk):
    """Partial L1 sums of conv3x3(x - y) features for one (batch, cout-block).

    in_vmem_im2col == False (tiny cin; K layout built in wrapper):
        d_ref : (1, H, W, 9*cin)     bf16  lane-contiguous im2col of (x - y)
    in_vmem_im2col == True  (cin % 128 == 0, e.g. VGG conv5_4):
        d_ref : (1, H+2, W+2, cin)   bf16  SAME-padded difference image
    w_ref : (9*cin, cout_blk)        bf16  3x3 weights flattened (kh, kw, cin)
    o_ref : (1, 1, 8, cout_blk)      f32   lane/sublane-dense partial L1 sums
    """
    rows = tile_h * w
    partial = None
    for t in range(h // tile_h):               # static, small trip count
        r0 = t * tile_h
        if in_vmem_im2col:
            # In-VMEM im2col: 9 static taps from the halo'd image; cin is a
            # multiple of 128 so the lane-dim concat is whole-vreg placement.
            taps = [d_ref[0, r0 + dh:r0 + dh + tile_h, dw:dw + w, :]
                    for dh in range(3) for dw in range(3)]
            lhs = jnp.concatenate(taps, axis=-1).reshape(rows, 9 * cin)
        else:
            # Wrapper already laid out the K = 9*cin axis lane-contiguously.
            lhs = d_ref[0, r0:r0 + tile_h, :, :].reshape(rows, 9 * cin)
        # ONE fused MXU matmul per row tile (K = 9*cin), f32 accumulation.
        feat = jnp.dot(lhs, w_ref[...], preferred_element_type=jnp.float32)
        # Fold |features| into a single vreg-shaped (8, cout_blk) tile before
        # the next tile so the live f32 state stays tiny (VALU adds only; no
        # cross-lane reduce, no masked 1-lane store, no read-modify-write).
        fold = jnp.abs(feat).reshape(rows // 8, 8, cout_blk).sum(axis=0)
        partial = fold if partial is None else partial + fold
    o_ref[...] = partial.reshape(1, 1, 8, cout_blk)


def perceptual_loss(x_nchw, y_nchw, conv_w_hwio, conv_b,
                    perceptual_weight=1.0, layer_weight=1.0):
    """PerceptualLoss.forward with default opts: returns (percep_loss, None)."""
    n, c, h, w = x_nchw.shape
    kh, kw, cin, cout = conv_w_hwio.shape
    assert (kh, kw, cin) == (3, 3, c)
    del conv_b  # bias cancels exactly in conv(x) - conv(y)

    # conv(x) - conv(y) == conv(x - y): stream ONE difference tensor.  The
    # subtraction runs in f32 (x ~ y in production use), then we cast to bf16
    # immediately so every subsequent wrapper op moves half the bytes.
    d = (x_nchw - y_nchw).astype(jnp.bfloat16)
    d = jnp.transpose(d, (0, 2, 3, 1))                       # (N, H, W, C)

    # Row tile: largest divisor of H whose row count tile_h*W is a multiple of
    # 8 and <= 256 -> M fills the MXU (256-wide on v6e/v7x) while keeping the
    # per-tile f32 result slab small (no guaranteed vreg spill at cout_p=512).
    tile_h = None
    for th in range(h, 0, -1):
        if h % th == 0 and (th * w) % 8 == 0 and th * w <= 256:
            tile_h = th
            break
    if tile_h is None:
        for th in range(1, h + 1):
            if h % th == 0 and (th * w) % 8 == 0:
                tile_h = th
                break
    assert tile_h is not None, "H*W must be a multiple of 8"

    in_vmem_im2col = (cin % 128 == 0)
    if in_vmem_im2col:
        # conv5_4-like shapes: HBM stream is exactly the padded bf16 diff
        # image (1.0x); the 9 taps are formed in VMEM inside the kernel.
        d_in = jnp.pad(d, ((0, 0), (1, 1), (1, 1), (0, 0)))  # (N, H+2, W+2, C)
        d_block = (1, h + 2, w + 2, cin)
    else:
        # Tiny-cin shapes (toy test, cin=4): NHWC would use only cin/128 lanes
        # per vreg, so build the lane-contiguous K = 9*cin im2col layout in the
        # wrapper (tensor is a few KB, so the 9x blow-up is irrelevant here).
        dp = jnp.pad(d, ((0, 0), (1, 1), (1, 1), (0, 0)))
        d_in = jnp.concatenate(
            [dp[:, dh:dh + h, dw:dw + w, :]
             for dh in range(3) for dw in range(3)], axis=-1)  # (N, H, W, 9*C)
        d_block = (1, h, w, 9 * cin)

    # Weights: HWIO flattened to (9*cin, cout_p); Cout zero-padded to a
    # lane-dense multiple of 128 (zero columns give exactly-zero features ->
    # contribute nothing to the L1 sum); bf16 for the MXU.  cout split into
    # 256-wide slabs when possible (MXU N width on v6e/v7x) else 128.
    cout_p = ((cout + 127) // 128) * 128
    cout_blk = 256 if cout_p % 256 == 0 else 128
    n_cb = cout_p // cout_blk
    w_flat = jnp.pad(conv_w_hwio, ((0, 0), (0, 0), (0, 0), (0, cout_p - cout)))
    w_flat = w_flat.reshape(9 * cin, cout_p).astype(jnp.bfloat16)

    kernel = functools.partial(_perc_l1_kernel, in_vmem_im2col=in_vmem_im2col,
                               h=h, w=w, cin=cin, tile_h=tile_h,
                               cout_blk=cout_blk)

    partials = pl.pallas_call(
        kernel,
        out_shape=jax.ShapeDtypeStruct((n, n_cb, 8, cout_blk), jnp.float32),
        grid=(n, n_cb),
        in_specs=[
            # Whole image per program; constant in the cout axis -> stays
            # resident in VMEM while j sweeps the weight blocks (no re-DMA).
            pl.BlockSpec(d_block, lambda i, j: (i, 0, 0, 0)),
            # Weight slab for this cout block; constant in the batch axis.
            pl.BlockSpec((9 * cin, cout_blk), lambda i, j: (0, j)),
        ],
        out_specs=pl.BlockSpec((1, 1, 8, cout_blk), lambda i, j: (i, j, 0, 0)),
        compiler_params=pltpu.CompilerParams(
            # Every program owns a disjoint output tile -> fully parallel grid;
            # (N, n_cb) keeps >= 2 programs for v7x's two TensorCores even
            # when N is tiny (as long as cout >= 256) or odd.
            dimension_semantics=("parallel", "parallel"),
            # Re-derived for v7x's 64 MiB physical VMEM: at conv5_4 scale the
            # double-buffered image + weight blocks + im2col/feature slabs are
            # a few MiB, so 32 MiB leaves large headroom on every generation.
            vmem_limit_bytes=32 * 1024 * 1024,
        ),
    )(d_in, w_flat)

    # L1Loss(reduction='mean') over the (N, Cout, H, W) feature difference.
    total = float(n * h * w * cout)
    percep = (jnp.sum(partials) / total) * layer_weight * perceptual_weight
    style = None  # style_weight == 0 in the default config
    # TODO(synk): the 'lpips' criterion branch (external LPIPS network) and the
    # runtime-random rotations/flips augmentations are not modelled here.
    return percep, style


def _reference(x_nchw, y_nchw, conv_w_hwio, conv_b):
    """Pure-JAX f32 reference (same synthetic conv + L1 mean)."""
    def feat(a):
        a = jnp.transpose(a, (0, 2, 3, 1))
        o = jax.lax.conv_general_dilated(
            a, conv_w_hwio, window_strides=(1, 1), padding="SAME",
            dimension_numbers=("NHWC", "HWIO", "NHWC"))
        return o + conv_b
    return jnp.mean(jnp.abs(feat(x_nchw) - feat(y_nchw)))


if __name__ == "__main__":
    key = jax.random.PRNGKey(0)
    kx, ky, kw_, kb = jax.random.split(key, 4)

    N, C, H, W = 2, 4, 16, 16
    COUT = 32

    x = jax.random.normal(kx, (N, C, H, W), jnp.float32)
    y = jax.random.normal(ky, (N, C, H, W), jnp.float32)
    conv_w = 0.1 * jax.random.normal(kw_, (3, 3, C, COUT), jnp.float32)  # HWIO
    conv_b = 0.1 * jax.random.normal(kb, (COUT,), jnp.float32)

    percep, style = perceptual_loss(x, y, conv_w, conv_b)
    percep = jax.block_until_ready(percep)

    ref = jax.block_until_ready(_reference(x, y, conv_w, conv_b))
    assert style is None
    # Difference tensor and weights are streamed in bf16 (f32 MXU accumulation).
    assert jnp.allclose(percep, ref, rtol=5e-3, atol=1e-3), (percep, ref)
    print("KERNEL_OK")
</pallas_src>

<mosaic_0001>
module attributes {stable_mosaic.version = 11 : i64} {
  func.func @_perc_l1_kernel(%arg0: i32, %arg1: i32, %arg2: memref<1x16x16x36xbf16, #tpu.memory_space<vmem>>, %arg3: memref<36x128xbf16, #tpu.memory_space<vmem>>, %arg4: memref<1x1x8x128xf32, #tpu.memory_space<vmem>>) attributes {dimension_semantics = [#tpu.dimension_semantics<parallel>, #tpu.dimension_semantics<parallel>], iteration_bounds = array<i64: 2, 1>, scalar_prefetch = 0 : i64, scratch_operands = 0 : i64, tpu.core_type = #tpu.core_type<tc>, window_params = [{transform_indices = @transform_0, window_bounds = array<i64: 1, 16, 16, 36>}, {transform_indices = @transform_1, window_bounds = array<i64: 36, 128>}, {transform_indices = @transform_2, window_bounds = array<i64: 1, 1, 8, 128>}]} {
    %c0 = arith.constant 0 : index
    %c0_0 = arith.constant 0 : index
    %c0_1 = arith.constant 0 : index
    %c0_2 = arith.constant 0 : index
    %0 = vector.load %arg2[%c0, %c0_0, %c0_1, %c0_2] : memref<1x16x16x36xbf16, #tpu.memory_space<vmem>>, vector<1x16x16x36xbf16>
    %1 = vector.shape_cast %0 : vector<1x16x16x36xbf16> to vector<16x16x36xbf16>
    %2 = vector.shape_cast %1 : vector<16x16x36xbf16> to vector<256x36xbf16>
    %c0_3 = arith.constant 0 : index
    %c0_4 = arith.constant 0 : index
    %3 = vector.load %arg3[%c0_3, %c0_4] : memref<36x128xbf16, #tpu.memory_space<vmem>>, vector<36x128xbf16>
    %cst = arith.constant dense<0.000000e+00> : vector<256x128xf32>
    %4 = tpu.matmul %2, %3, %cst {dimension_numbers = #tpu.dot_dimension_numbers<[1], [0], [0], [1], [0, 0, 1, 1], [], []>} : vector<256x36xbf16>, vector<36x128xbf16>, vector<256x128xf32> -> vector<256x128xf32>
    %5 = math.absf %4 : vector<256x128xf32>
    %6 = vector.shape_cast %5 : vector<256x128xf32> to vector<32x8x128xf32>
    %cst_5 = arith.constant dense<0.000000e+00> : vector<8x128xf32>
    %7 = vector.multi_reduction <add>, %6, %cst_5 [0] : vector<32x8x128xf32> to vector<8x128xf32>
    %8 = vector.shape_cast %7 : vector<8x128xf32> to vector<1x1x8x128xf32>
    %c0_6 = arith.constant 0 : index
    %c0_7 = arith.constant 0 : index
    %c0_8 = arith.constant 0 : index
    %c0_9 = arith.constant 0 : index
    %9 = vector.load %arg4[%c0_6, %c0_7, %c0_8, %c0_9] : memref<1x1x8x128xf32, #tpu.memory_space<vmem>>, vector<1x1x8x128xf32>
    tpu.vector_store %arg4[%c0_6, %c0_7, %c0_8, %c0_9], %8 {strides = array<i32>} : memref<1x1x8x128xf32, #tpu.memory_space<vmem>>, vector<1x1x8x128xf32>,
    return
  }
  func.func @transform_0(%arg0: i32, %arg1: i32) -> (i32, i32, i32, i32) {
    %c0_i32 = arith.constant 0 : i32
    %c0_i32_0 = arith.constant 0 : i32
    %c0_i32_1 = arith.constant 0 : i32
    %c0_i32_2 = arith.constant 0 : i32
    return %arg0, %c0_i32, %c0_i32_0, %c0_i32_1 : i32, i32, i32, i32
  }
  func.func @transform_1(%arg0: i32, %arg1: i32) -> (i32, i32) {
    %c0_i32 = arith.constant 0 : i32
    %c0_i32_0 = arith.constant 0 : i32
    return %c0_i32, %arg1 : i32, i32
  }
  func.func @transform_2(%arg0: i32, %arg1: i32) -> (i32, i32, i32, i32) {
    %c0_i32 = arith.constant 0 : i32
    %c0_i32_0 = arith.constant 0 : i32
    %c0_i32_1 = arith.constant 0 : i32
    return %arg0, %arg1, %c0_i32, %c0_i32_0 : i32, i32, i32, i32
  }
}

</mosaic_0001>

<llo_original>
// kernel: tpu_custom_call.1
$region0: #{tpu_custom_call.1}
  #allocation0 [shape = 'u32[]', space=smem, size = 0x4, offset = 0x4, fixed_abs, tag = 'smem constant byte address 0x4 - core index']
  #allocation1 [shape = 'u32[144,128]{1,0:T(1,128)}', space=vmem, size = 0x12000, scoped, tag = 'internal scratch']
  %s0 = inlined_call_operand.hbm [shape: bf16[2,16,16,36], index: 0, kind: input, shape index: {}]
  %s1 = inlined_call_operand.hbm [shape: bf16[36,128], index: 1, kind: input, shape index: {}]
  %s2 = inlined_call_operand.hbm [shape: f32[2,1,8,128], index: 2, kind: output, shape index: {}]
  %s3 = sld [smem:[#allocation0]]
  $region49: #{tpu_custom_call.1} parent=0
    _
  %s5 = ssub.s32 1, %s3
  %s6 = scalar_select 0, %s5, %s3
  $region1: #{tpu_custom_call.1} parent=0
    #allocation2 [shape = 'u8[131072]{0}', space=vmem, size = 0x20000, scoped, tag = 'input window, operand 0']
    #allocation3 [shape = 's32[2]{0}', space=sflag, size = 0x8, scoped, tag = 'scoped memory for tpu_custom_call.1']
    #allocation4 [shape = 's32[2]{0}', space=sflag, size = 0x8, scoped, tag = 'scoped memory for tpu_custom_call.1']
    #allocation5 [shape = 'u8[10240]{0}', space=vmem, size = 0x2800, scoped, tag = 'input window, operand 1, single buffered']
    #allocation6 [shape = 's32[1]{0}', space=sflag, size = 0x4, scoped, tag = 'scoped memory for tpu_custom_call.1']
    #allocation7 [shape = 'u8[8192]{0}', space=vmem, size = 0x2000, scoped, tag = 'output window, operand 0']
    %7 = vsyncpa [#allocation3], 0
    %s8 = scalar_lea.sflag [#allocation3], 1
    %9 = vsyncpa %s8, 0
    %10 = vsyncpa [#allocation6], 0
    %11 = vsyncpa [#allocation4], 0
    %s12 = scalar_lea.sflag [#allocation4], 1
    %13 = vsyncpa %s12, 0
    loop: start=0, step=1, limit=4
    $region2: #{tpu_custom_call.1} parent=1 // loop_pre_header
      _
    $region3: #{tpu_custom_call.1} parent=1 // loop_header
      %s15 = sphi 0, %s19
      %p16 = scmp.ge.s32.totalorder %s15, 4
      %s22 = sphi 0, %s34
      %s23 = sphi 0, %s30
      %s24 = sphi 0, %s22
      %s25 = sphi 0, %s23
      %s26 = sphi 0, %s24
      %s27 = sphi 0, %s25
      %s37 = sphi 0, %s39
      %s40 = sphi 0, %s37
      %s41 = sphi 0, %s40
      %s57 = sphi 0, %s41
      %s63 = sphi 0, %s65
      %s66 = sphi 0, %s63
      %s67 = sphi 0, %s66
      %s83 = sphi 0, %s67
      %s91 = sphi 0, %s93
      %s94 = sphi 0, %s91
      %s95 = sphi 0, %s94
      %s111 = sphi 0, %s95
    $region4: #{tpu_custom_call.1} parent=1 // loop_header_branch
      %18 = sbr.rel (%p16) target = $region8
    $region5: #{tpu_custom_call.1} parent=1 // loop_body
      %s20 = ssub.s32 %s15, 1
      %s21 = ssub.s32 %s15, 2
      %s28 = sadd.s32 1, %s23
      %p29 = scmp.ge.s32.totalorder %s28, 1
      %s30 = scalar_select %p29, 0, %s28
      %s31 = sadd.s32 1, %s22
      %s32 = scalar_select %p29, %s31, %s22
      %p33 = scmp.ge.s32.totalorder %s32, 2
      %s34 = scalar_select %p33, 0, %s32
      %s35 = ssub.s32 %s22, %s34
      %p36 = scmp.eq.s32.totalorder %s35, 0
      %s38 = sadd.s32 %s37, 1
      %s39 = scalar_select %p36, %s37, %s38
      %p42 = pneg %p36
      %p43 = scmp.eq.s32.totalorder %s15, 1
      %p44 = por %p42, %p43
      %p45 = scmp.ne.s32.totalorder %s37, %s40
      %p46 = scmp.eq.s32.totalorder %s15, 0
      %p47 = por %p45, %p46
      %p48 = scmp.ne.s32.totalorder %s37, %s40
      %p49 = scmp.eq.s32.totalorder %s20, 1
      %p50 = por %p48, %p49
      %p51 = scmp.ne.s32.totalorder %s40, %s41
      %p52 = scmp.eq.s32.totalorder %s20, 0
      %p53 = por %p51, %p52
      %p54 = scmp.ne.s32.totalorder %s40, %s41
      %p55 = scmp.eq.s32.totalorder %s21, 1
      %p56 = por %p54, %p55
      %p58 = scmp.ne.s32.totalorder %s41, %s57
      %p59 = scmp.eq.s32.totalorder %s21, 0
      %p60 = por %p58, %p59
      %s61 = ssub.s32 %s23, %s30
      %p62 = scmp.eq.s32.totalorder %s61, 0
      %s64 = sadd.s32 %s63, 1
      %s65 = scalar_select %p62, %s63, %s64
      %p68 = pneg %p62
      %p69 = scmp.eq.s32.totalorder %s15, 1
      %p70 = por %p68, %p69
      %p71 = scmp.ne.s32.totalorder %s63, %s66
      %p72 = scmp.eq.s32.totalorder %s15, 0
      %p73 = por %p71, %p72
      %p74 = scmp.ne.s32.totalorder %s63, %s66
      %p75 = scmp.eq.s32.totalorder %s20, 1
      %p76 = por %p74, %p75
      %p77 = scmp.ne.s32.totalorder %s66, %s67
      %p78 = scmp.eq.s32.totalorder %s20, 0
      %p79 = por %p77, %p78
      %p80 = scmp.ne.s32.totalorder %s66, %s67
      %p81 = scmp.eq.s32.totalorder %s21, 1
      %p82 = por %p80, %p81
      %p84 = scmp.ne.s32.totalorder %s67, %s83
      %p85 = scmp.eq.s32.totalorder %s21, 0
      %p86 = por %p84, %p85
      %s87 = ssub.s32 %s22, %s34
      %s88 = ssub.s32 %s23, %s30
      %s89 = sor.u32 %s87, %s88
      %p90 = scmp.eq.s32.totalorder %s89, 0
      %s92 = sadd.s32 %s91, 1
      %s93 = scalar_select %p90, %s91, %s92
      %p96 = pneg %p90
      %p97 = scmp.eq.s32.totalorder %s15, 1
      %p98 = por %p96, %p97
      %p99 = scmp.ne.s32.totalorder %s91, %s94
      %p100 = scmp.eq.s32.totalorder %s15, 0
      %p101 = por %p99, %p100
      %p102 = scmp.ne.s32.totalorder %s91, %s94
      %p103 = scmp.eq.s32.totalorder %s20, 1
      %p104 = por %p102, %p103
      %p105 = scmp.ne.s32.totalorder %s94, %s95
      %p106 = scmp.eq.s32.totalorder %s20, 0
      %p107 = por %p105, %p106
      %p108 = scmp.ne.s32.totalorder %s94, %s95
      %p109 = scmp.eq.s32.totalorder %s21, 1
      %p110 = por %p108, %p109
      %p112 = scmp.ne.s32.totalorder %s95, %s111
      %p113 = scmp.eq.s32.totalorder %s21, 0
      %p114 = por %p112, %p113
      %p115 = scmp.le.s32.totalorder 1, %s15
      %p116 = scmp.lt.s32.totalorder %s15, 3
      %p117 = pnand %p115, %p116
      %p118 = pneg %p117
      // Predicated region
      $region9: #{tpu_custom_call.1} parent=5 // pred_check
        _
      $region10: #{tpu_custom_call.1} parent=5 // pred_check_branch
        %120 = sbr.rel (%p117) target = $region12
      $region11: #{tpu_custom_call.1} parent=5 // pred_region
        %s121 = ssub.s32 %s15, 1
        // Predicated region
        $region13: #{tpu_custom_call.1} parent=11 // pred_check
          %p122 = pneg %p79
        $region14: #{tpu_custom_call.1} parent=11 // pred_check_branch
          %124 = sbr.rel (%p122) target = $region16
        $region15: #{tpu_custom_call.1} parent=11 // pred_region
          %s126 = ssub.s32 320, 320
          %127 = vsyncadd [#allocation6], %s126
          %s128 = smul.addr %s25, 64
          %s129 = scalar_lea.hbm %s1, %s128
          %s130 = sshll.u32 [#allocation5], 4
          %s131 = int_to_ptr.vmem [resolvable:$true] %s130
          %136 = dma.hbm_to_vmem [thread:$0]  %s129, 320, %s131, [#allocation6], 64, 64, 4
        $region16: #{tpu_custom_call.1} parent=11 // pred_fallthru
          _
      $region12: #{tpu_custom_call.1} parent=5 // pred_fallthru
        _
      %p137 = scmp.lt.s32.totalorder %s15, 2
      // Predicated region
      $region17: #{tpu_custom_call.1} parent=5 // pred_check
        %p138 = pneg %p137
      $region18: #{tpu_custom_call.1} parent=5 // pred_check_branch
        %140 = sbr.rel (%p138) target = $region20
      $region19: #{tpu_custom_call.1} parent=5 // pred_region
        // Predicated region
        $region21: #{tpu_custom_call.1} parent=19 // pred_check
          %p141 = pneg %p47
        $region22: #{tpu_custom_call.1} parent=19 // pred_check_branch
          %143 = sbr.rel (%p141) target = $region24
        $region23: #{tpu_custom_call.1} parent=19 // pred_region
          %s144 = sand.u32 %s37, 1
          %s145 = scalar_lea.sflag [#allocation3], %s144
          %s146 = sand.u32 %s37, 1
          %s147 = smul.addr %s146, 128
          %s148 = scalar_lea.vmem [#allocation2], %s147
          %s150 = ssub.s32 2048, 2048
          %151 = vsyncadd %s145, %s150
          %s152 = smul.addr %s22, 32
          %s153 = smul.addr %s152, 64
          %s154 = scalar_lea.hbm %s0, %s153
          %s155 = sshll.u32 %s148, 4
          %s156 = int_to_ptr.vmem [resolvable:$true] %s155
          %161 = dma.hbm_to_vmem [thread:$0]  %s154, 2048, %s156, %s145, 64, 64, 4
        $region24: #{tpu_custom_call.1} parent=19 // pred_fallthru
          _
      $region20: #{tpu_custom_call.1} parent=5 // pred_fallthru
        _
      %p162 = scmp.le.s32.totalorder 1, %s15
      %p163 = scmp.lt.s32.totalorder %s15, 3
      %p164 = pnand %p162, %p163
      %p165 = pneg %p164
      // Predicated region
      $region25: #{tpu_custom_call.1} parent=5 // pred_check
        _
      $region26: #{tpu_custom_call.1} parent=5 // pred_check_branch
        %167 = sbr.rel (%p164) target = $region28
      $region27: #{tpu_custom_call.1} parent=5 // pred_region
        %s168 = ssub.s32 %s15, 1
        %s169 = sand.u32 %s40, 1
        %s170 = scalar_lea.sflag [#allocation3], %s169
        %s171 = sand.u32 %s40, 1
        %s172 = smul.addr %s171, 128
        %s173 = scalar_lea.vmem [#allocation2], %s172
        // Predicated region
        $region29: #{tpu_custom_call.1} parent=27 // pred_check
          %p174 = pneg %p53
        $region30: #{tpu_custom_call.1} parent=27 // pred_check_branch
          %176 = sbr.rel (%p174) target = $region32
        $region31: #{tpu_custom_call.1} parent=27 // pred_region
          %177 = dma.done %s170, 2048
        $region32: #{tpu_custom_call.1} parent=27 // pred_fallthru
          _
        // Predicated region
        $region33: #{tpu_custom_call.1} parent=27 // pred_check
          %p178 = pneg %p79
        $region34: #{tpu_custom_call.1} parent=27 // pred_check_branch
          %180 = sbr.rel (%p178) target = $region36
        $region35: #{tpu_custom_call.1} parent=27 // pred_region
          %181 = dma.done [#allocation6], 320
        $region36: #{tpu_custom_call.1} parent=27 // pred_fallthru
          _
        %s182 = sand.u32 %s40, 1
        %s183 = scalar_lea.sflag [#allocation3], %s182
        %s184 = sand.u32 %s40, 1
        %s185 = smul.addr %s184, 128
        %s186 = scalar_lea.vmem [#allocation2], %s185
        %p187 = pneg %p53
        %p188 = pneg %p50
        %p189 = pneg %p79
        %p190 = pneg %p76
        %p191 = pneg %p107
        %p192 = pneg %p104
        %s193 = sand.u32 %s94, 1
        %s194 = scalar_lea.sflag [#allocation4], %s193
        %s195 = sand.u32 %s94, 1
        %s196 = smul.addr %s195, 8
        %s197 = scalar_lea.vmem [#allocation7], %s196
        %v199 = vld [vmem:[%s173] sm:$0xf]
        %v200 = vld [vmem:[%s173 + $0x4] sm:$0xf]
        %v201 = vld [vmem:[%s173 + $0x8] sm:$0xf]
        %v202 = vld [vmem:[%s173 + $0xc] sm:$0xf]
        %v203 = vld [vmem:[%s173 + $0x10] sm:$0xf]
        %v204 = vld [vmem:[%s173 + $0x14] sm:$0xf]
        %v205 = vld [vmem:[%s173 + $0x18] sm:$0xf]
        %v206 = vld [vmem:[%s173 + $0x1c] sm:$0xf]
        %v207 = vld [vmem:[%s173 + $0x20] sm:$0xf]
        %v208 = vld [vmem:[%s173 + $0x24] sm:$0xf]
        %v209 = vld [vmem:[%s173 + $0x28] sm:$0xf]
        %v210 = vld [vmem:[%s173 + $0x2c] sm:$0xf]
        %v211 = vld [vmem:[%s173 + $0x30] sm:$0xf]
        %v212 = vld [vmem:[%s173 + $0x34] sm:$0xf]
        %v213 = vld [vmem:[%s173 + $0x38] sm:$0xf]
        %v214 = vld [vmem:[%s173 + $0x3c] sm:$0xf]
        %v215 = vld [vmem:[%s173 + $0x40] sm:$0xf]
        %v216 = vld [vmem:[%s173 + $0x44] sm:$0xf]
        %v217 = vld [vmem:[%s173 + $0x48] sm:$0xf]
        %v218 = vld [vmem:[%s173 + $0x4c] sm:$0xf]
        %v219 = vld [vmem:[%s173 + $0x50] sm:$0xf]
        %v220 = vld [vmem:[%s173 + $0x54] sm:$0xf]
        %v221 = vld [vmem:[%s173 + $0x58] sm:$0xf]
        %v222 = vld [vmem:[%s173 + $0x5c] sm:$0xf]
        %v223 = vld [vmem:[%s173 + $0x60] sm:$0xf]
        %v224 = vld [vmem:[%s173 + $0x64] sm:$0xf]
        %v225 = vld [vmem:[%s173 + $0x68] sm:$0xf]
        %v226 = vld [vmem:[%s173 + $0x6c] sm:$0xf]
        %v227 = vld [vmem:[%s173 + $0x70] sm:$0xf]
        %v228 = vld [vmem:[%s173 + $0x74] sm:$0xf]
        %v229 = vld [vmem:[%s173 + $0x78] sm:$0xf]
        %v230 = vld [vmem:[%s173 + $0x7c] sm:$0xf]
        %v231 = vld [vmem:[#allocation5] sm:$0xf]
        %v232 = vld [vmem:[#allocation5 + $0x4] sm:$0xf]
        %v233 = vld [vmem:[#allocation5 + $0x8] sm:$0xf]
        %v234 = vld [vmem:[#allocation5 + $0xc] sm:$0xf]
        %v235 = vld [vmem:[#allocation5 + $0x10] sm:$0x3]
        %v268 = vunpack.c.l.b16 %v199
        %v269 = vunpack.c.l.b16 %v200
        %v270 = vunpack.c.l.b16 %v201
        %v271 = vunpack.c.l.b16 %v202
        %v272 = vunpack.c.l.b16 %v203
        %v273 = vunpack.c.l.b16 %v204
        %v274 = vunpack.c.l.b16 %v205
        %v275 = vunpack.c.l.b16 %v206
        %v276 = vunpack.c.l.b16 %v207
        %v277 = vunpack.c.l.b16 %v208
        %v278 = vunpack.c.l.b16 %v209
        %v279 = vunpack.c.l.b16 %v210
        %v280 = vunpack.c.l.b16 %v211
        %v281 = vunpack.c.l.b16 %v212
        %v282 = vunpack.c.l.b16 %v213
        %v283 = vunpack.c.l.b16 %v214
        %v284 = vunpack.c.l.b16 %v215
        %v285 = vunpack.c.l.b16 %v216
        %v286 = vunpack.c.l.b16 %v217
        %v287 = vunpack.c.l.b16 %v218
        %v288 = vunpack.c.l.b16 %v219
        %v289 = vunpack.c.l.b16 %v220
        %v290 = vunpack.c.l.b16 %v221
        %v291 = vunpack.c.l.b16 %v222
        %v292 = vunpack.c.l.b16 %v223
        %v293 = vunpack.c.l.b16 %v224
        %v294 = vunpack.c.l.b16 %v225
        %v295 = vunpack.c.l.b16 %v226
        %v296 = vunpack.c.l.b16 %v227
        %v297 = vunpack.c.l.b16 %v228
        %v298 = vunpack.c.l.b16 %v229
        %v299 = vunpack.c.l.b16 %v230
        %v300 = vpack.c.b16 %v269, %v268
        %v301 = vpack.c.b16 %v271, %v270
        %v302 = vpack.c.b16 %v273, %v272
        %v303 = vpack.c.b16 %v275, %v274
        %v304 = vpack.c.b16 %v277, %v276
        %v305 = vpack.c.b16 %v279, %v278
        %v306 = vpack.c.b16 %v281, %v280
        %v307 = vpack.c.b16 %v283, %v282
        %v308 = vpack.c.b16 %v285, %v284
        %v309 = vpack.c.b16 %v287, %v286
        %v310 = vpack.c.b16 %v289, %v288
        %v311 = vpack.c.b16 %v291, %v290
        %v312 = vpack.c.b16 %v293, %v292
        %v313 = vpack.c.b16 %v295, %v294
        %v314 = vpack.c.b16 %v297, %v296
        %v315 = vpack.c.b16 %v299, %v298
        %v321 = vunpack.c.l.b16 %v231
        %v322 = vunpack.c.l.b16 %v232
        %v323 = vunpack.c.l.b16 %v233
        %v324 = vunpack.c.l.b16 %v234
        %v325 = vunpack.c.l.b16 %v235
        %v326 = vpack.c.b16 %v322, %v321
        %v327 = vpack.c.b16 %v324, %v323
        %v328 = vpack.c.b16 %v325, %v325
        %vm331 = vcmask 293888
        %v333 = vsel %vm331, %v300, 0
        %v336 = vsel %vm331, %v301, 0
        %v339 = vsel %vm331, %v302, 0
        %v342 = vsel %vm331, %v303, 0
        %v345 = vsel %vm331, %v304, 0
        %v348 = vsel %vm331, %v305, 0
        %v351 = vsel %vm331, %v306, 0
        %v354 = vsel %vm331, %v307, 0
        %v357 = vsel %vm331, %v308, 0
        %v360 = vsel %vm331, %v309, 0
        %v363 = vsel %vm331, %v310, 0
        %v366 = vsel %vm331, %v311, 0
        %v369 = vsel %vm331, %v312, 0
        %v372 = vsel %vm331, %v313, 0
        %v375 = vsel %vm331, %v314, 0
        %v378 = vsel %vm331, %v315, 0
        %vm380 = vcmask 1041408
        %v382 = vsel %vm380, %v328, 0
        %384 = vmatprep.subr.bf16.mxu0 0
        %385 = vmatpush1.bf16.msra.mxu0 %v326
        %386 = vmatprep.subr.bf16.mxu0 0
        %387 = vmatpush1.bf16.msra.mxu0 %v327
        %388 = vmatprep.subr.bf16.mxu0 0
        %389 = vmatpush1.bf16.msra.mxu0 %v382
        %390 = vmatprep.subr.bf16.mxu0 0
        %391 = vmatpush1.bf16.msra.mxu0 0
        %392 = vmatprep.subr.bf16.mxu0 0
        %393 = vmatpush1.bf16.msra.mxu0 0
        %394 = vmatprep.subr.bf16.mxu0 0
        %395 = vmatpush1.bf16.msra.mxu0 0
        %396 = vmatprep.subr.bf16.mxu0 0
        %397 = vmatpush1.bf16.msra.mxu0 0
        %398 = vmatprep.subr.bf16.mxu0 0
        %399 = vmatpush1.bf16.msra.mxu0 0
        %400 = vmatprep.subr.bf16.mxu0 0
        %401 = vmatpush1.bf16.msra.mxu0 0
        %402 = vmatprep.subr.bf16.mxu0 0
        %403 = vmatpush1.bf16.msra.mxu0 0
        %404 = vmatprep.subr.bf16.mxu0 0
        %405 = vmatpush1.bf16.msra.mxu0 0
        %406 = vmatprep.subr.bf16.mxu0 0
        %407 = vmatpush1.bf16.msra.mxu0 0
        %408 = vmatprep.subr.bf16.mxu0 0
        %409 = vmatpush1.bf16.msra.mxu0 0
        %410 = vmatprep.subr.bf16.mxu0 0
        %411 = vmatpush1.bf16.msra.mxu0 0
        %412 = vmatprep.subr.bf16.mxu0 0
        %413 = vmatpush1.bf16.msra.mxu0 0
        %414 = vmatprep.subr.bf16.mxu0 0
        %415 = vmatpush1.bf16.msra.mxu0 0
        %416 = vmatprep.mubr.bf16.mxu0 0
        %417 = vmatmul.mubr.bf16.gmra.mrb[0].mxu0 %v333
        %v418 = vpop.f32.mrb[0].mxu0
        %v419 = vadd.f32 0.0, %v418
        %v420 = vpop.f32.mrb[0].mxu0
        %v421 = vpop.f32.mrb[0].mxu0
        %v422 = vadd.f32 0.0, %v421
        %v423 = vpop.f32.mrb[0].mxu0
        %424 = vmatprep.mubr.bf16.mxu0 0
        %425 = vmatmul.mubr.bf16.gmra.mrb[0].mxu0 %v336
        %v426 = vpop.f32.mrb[0].mxu0
        %v427 = vadd.f32 0.0, %v426
        %v428 = vpop.f32.mrb[0].mxu0
        %v429 = vpop.f32.mrb[0].mxu0
        %v430 = vadd.f32 0.0, %v429
        %v431 = vpop.f32.mrb[0].mxu0
        %432 = vmatprep.mubr.bf16.mxu0 0
        %433 = vmatmul.mubr.bf16.gmra.mrb[0].mxu0 %v339
        %v434 = vpop.f32.mrb[0].mxu0
        %v435 = vadd.f32 0.0, %v434
        %v436 = vpop.f32.mrb[0].mxu0
        %v437 = vpop.f32.mrb[0].mxu0
        %v438 = vadd.f32 0.0, %v437
        %v439 = vpop.f32.mrb[0].mxu0
        %440 = vmatprep.mubr.bf16.mxu0 0
        %441 = vmatmul.mubr.bf16.gmra.mrb[0].mxu0 %v342
        %v442 = vpop.f32.mrb[0].mxu0
        %v443 = vadd.f32 0.0, %v442
        %v444 = vpop.f32.mrb[0].mxu0
        %v445 = vpop.f32.mrb[0].mxu0
        %v446 = vadd.f32 0.0, %v445
        %v447 = vpop.f32.mrb[0].mxu0
        %448 = vmatprep.mubr.bf16.mxu0 0
        %449 = vmatmul.mubr.bf16.gmra.mrb[0].mxu0 %v345
        %v450 = vpop.f32.mrb[0].mxu0
        %v451 = vadd.f32 0.0, %v450
        %v452 = vpop.f32.mrb[0].mxu0
        %v453 = vpop.f32.mrb[0].mxu0
        %v454 = vadd.f32 0.0, %v453
        %v455 = vpop.f32.mrb[0].mxu0
        %456 = vmatprep.mubr.bf16.mxu0 0
        %457 = vmatmul.mubr.bf16.gmra.mrb[0].mxu0 %v348
        %v458 = vpop.f32.mrb[0].mxu0
        %v459 = vadd.f32 0.0, %v458
        %v460 = vpop.f32.mrb[0].mxu0
        %v461 = vpop.f32.mrb[0].mxu0
        %v462 = vadd.f32 0.0, %v461
        %v463 = vpop.f32.mrb[0].mxu0
        %464 = vmatprep.mubr.bf16.mxu0 0
        %465 = vmatmul.mubr.bf16.gmra.mrb[0].mxu0 %v351
        %v466 = vpop.f32.mrb[0].mxu0
        %v467 = vadd.f32 0.0, %v466
        %v468 = vpop.f32.mrb[0].mxu0
        %v469 = vpop.f32.mrb[0].mxu0
        %v470 = vadd.f32 0.0, %v469
        %v471 = vpop.f32.mrb[0].mxu0
        %472 = vmatprep.mubr.bf16.mxu0 0
        %473 = vmatmul.mubr.bf16.gmra.mrb[0].mxu0 %v354
        %v474 = vpop.f32.mrb[0].mxu0
        %v475 = vadd.f32 0.0, %v474
        %v476 = vpop.f32.mrb[0].mxu0
        %v477 = vpop.f32.mrb[0].mxu0
        %v478 = vadd.f32 0.0, %v477
        %v479 = vpop.f32.mrb[0].mxu0
        %480 = vmatprep.mubr.bf16.mxu0 0
        %481 = vmatmul.mubr.bf16.gmra.mrb[0].mxu0 %v357
        %v482 = vpop.f32.mrb[0].mxu0
        %v483 = vadd.f32 0.0, %v482
        %v484 = vpop.f32.mrb[0].mxu0
        %v485 = vpop.f32.mrb[0].mxu0
        %v486 = vadd.f32 0.0, %v485
        %v487 = vpop.f32.mrb[0].mxu0
        %488 = vmatprep.mubr.bf16.mxu0 0
        %489 = vmatmul.mubr.bf16.gmra.mrb[0].mxu0 %v360
        %v490 = vpop.f32.mrb[0].mxu0
        %v491 = vadd.f32 0.0, %v490
        %v492 = vpop.f32.mrb[0].mxu0
        %v493 = vpop.f32.mrb[0].mxu0
        %v494 = vadd.f32 0.0, %v493
        %v495 = vpop.f32.mrb[0].mxu0
        %496 = vmatprep.mubr.bf16.mxu0 0
        %497 = vmatmul.mubr.bf16.gmra.mrb[0].mxu0 %v363
        %v498 = vpop.f32.mrb[0].mxu0
        %v499 = vadd.f32 0.0, %v498
        %v500 = vpop.f32.mrb[0].mxu0
        %v501 = vpop.f32.mrb[0].mxu0
        %v502 = vadd.f32 0.0, %v501
        %v503 = vpop.f32.mrb[0].mxu0
        %504 = vmatprep.mubr.bf16.mxu0 0
        %505 = vmatmul.mubr.bf16.gmra.mrb[0].mxu0 %v366
        %v506 = vpop.f32.mrb[0].mxu0
        %v507 = vadd.f32 0.0, %v506
        %v508 = vpop.f32.mrb[0].mxu0
        %v509 = vpop.f32.mrb[0].mxu0
        %v510 = vadd.f32 0.0, %v509
        %v511 = vpop.f32.mrb[0].mxu0
        %512 = vmatprep.mubr.bf16.mxu0 0
        %513 = vmatmul.mubr.bf16.gmra.mrb[0].mxu0 %v369
        %v514 = vpop.f32.mrb[0].mxu0
        %v515 = vadd.f32 0.0, %v514
        %v516 = vpop.f32.mrb[0].mxu0
        %v517 = vpop.f32.mrb[0].mxu0
        %v518 = vadd.f32 0.0, %v517
        %v519 = vpop.f32.mrb[0].mxu0
        %520 = vmatprep.mubr.bf16.mxu0 0
        %521 = vmatmul.mubr.bf16.gmra.mrb[0].mxu0 %v372
        %v522 = vpop.f32.mrb[0].mxu0
        %v523 = vadd.f32 0.0, %v522
        %v524 = vpop.f32.mrb[0].mxu0
        %v525 = vpop.f32.mrb[0].mxu0
        %v526 = vadd.f32 0.0, %v525
        %v527 = vpop.f32.mrb[0].mxu0
        %528 = vmatprep.mubr.bf16.mxu0 0
        %529 = vmatmul.mubr.bf16.gmra.mrb[0].mxu0 %v375
        %v530 = vpop.f32.mrb[0].mxu0
        %v531 = vadd.f32 0.0, %v530
        %v532 = vpop.f32.mrb[0].mxu0
        %v533 = vpop.f32.mrb[0].mxu0
        %v534 = vadd.f32 0.0, %v533
        %v535 = vpop.f32.mrb[0].mxu0
        %536 = vmatprep.mubr.bf16.mxu0 0
        %537 = vmatmul.mubr.bf16.gmra.mrb[0].mxu0 %v378
        %v538 = vpop.f32.mrb[0].mxu0
        %v539 = vadd.f32 0.0, %v538
        %v540 = vpop.f32.mrb[0].mxu0
        %v541 = vpop.f32.mrb[0].mxu0
        %v542 = vadd.f32 0.0, %v541
        %v543 = vpop.f32.mrb[0].mxu0
        %544 = vdwg.mxu0
        %v545 = vand.u32 2147483647, %v419
        %v546 = vand.u32 2147483647, %v422
        %v547 = vand.u32 2147483647, %v427
        %v548 = vand.u32 2147483647, %v430
        %v549 = vand.u32 2147483647, %v435
        %v550 = vand.u32 2147483647, %v438
        %v551 = vand.u32 2147483647, %v443
        %v552 = vand.u32 2147483647, %v446
        %v553 = vand.u32 2147483647, %v451
        %v554 = vand.u32 2147483647, %v454
        %v555 = vand.u32 2147483647, %v459
        %v556 = vand.u32 2147483647, %v462
        %v557 = vand.u32 2147483647, %v467
        %v558 = vand.u32 2147483647, %v470
        %v559 = vand.u32 2147483647, %v475
        %v560 = vand.u32 2147483647, %v478
        %v561 = vand.u32 2147483647, %v483
        %v562 = vand.u32 2147483647, %v486
        %v563 = vand.u32 2147483647, %v491
        %v564 = vand.u32 2147483647, %v494
        %v565 = vand.u32 2147483647, %v499
        %v566 = vand.u32 2147483647, %v502
        %v567 = vand.u32 2147483647, %v507
        %v568 = vand.u32 2147483647, %v510
        %v569 = vand.u32 2147483647, %v515
        %v570 = vand.u32 2147483647, %v518
        %v571 = vand.u32 2147483647, %v523
        %v572 = vand.u32 2147483647, %v526
        %v573 = vand.u32 2147483647, %v531
        %v574 = vand.u32 2147483647, %v534
        %v575 = vand.u32 2147483647, %v539
        %v576 = vand.u32 2147483647, %v542
        %v577 = vadd.f32 %v545, %v546
        %v578 = vadd.f32 %v577, %v547
        %v579 = vadd.f32 %v578, %v548
        %v580 = vadd.f32 %v579, %v549
        %v581 = vadd.f32 %v580, %v550
        %v582 = vadd.f32 %v581, %v551
        %v583 = vadd.f32 %v582, %v552
        %v584 = vadd.f32 %v583, %v553
        %v585 = vadd.f32 %v584, %v554
        %v586 = vadd.f32 %v585, %v555
        %v587 = vadd.f32 %v586, %v556
        %v588 = vadd.f32 %v587, %v557
        %v589 = vadd.f32 %v588, %v558
        %v590 = vadd.f32 %v589, %v559
        %v591 = vadd.f32 %v590, %v560
        %v592 = vadd.f32 %v591, %v561
        %v593 = vadd.f32 %v592, %v562
        %v594 = vadd.f32 %v593, %v563
        %v595 = vadd.f32 %v594, %v564
        %v596 = vadd.f32 %v595, %v565
        %v597 = vadd.f32 %v596, %v566
        %v598 = vadd.f32 %v597, %v567
        %v599 = vadd.f32 %v598, %v568
        %v600 = vadd.f32 %v599, %v569
        %v601 = vadd.f32 %v600, %v570
        %v602 = vadd.f32 %v601, %v571
        %v603 = vadd.f32 %v602, %v572
        %v604 = vadd.f32 %v603, %v573
        %v605 = vadd.f32 %v604, %v574
        %v606 = vadd.f32 %v605, %v575
        %v607 = vadd.f32 %v606, %v576
        %608 = vst [vmem:[%s197] sm:$0xff] %v607
        %s609 = sand.u32 %s94, 1
        %s610 = scalar_lea.sflag [#allocation4], %s609
        %s611 = sand.u32 %s94, 1
        %s612 = smul.addr %s611, 8
        %s613 = scalar_lea.vmem [#allocation7], %s612
        // Predicated region
        $region37: #{tpu_custom_call.1} parent=27 // pred_check
          %p614 = pneg %p104
        $region38: #{tpu_custom_call.1} parent=27 // pred_check_branch
          %616 = sbr.rel (%p614) target = $region40
        $region39: #{tpu_custom_call.1} parent=27 // pred_region
          %s618 = ssub.s32 128, 128
          %619 = vsyncadd %s610, %s618
          %s620 = sadd.s32 %s25, %s24
          %s621 = smul.addr %s620, 128
          %s622 = scalar_lea.hbm %s2, %s621
          %s624 = sshll.u32 %s613, 4
          %s625 = int_to_ptr.vmem [resolvable:$true] %s624
          %627 = dma.vmem_to_hbm [thread:$0]  %s625, 128, %s622, %s610
        $region40: #{tpu_custom_call.1} parent=27 // pred_fallthru
          _
      $region28: #{tpu_custom_call.1} parent=5 // pred_fallthru
        _
      %p628 = scmp.le.s32.totalorder 2, %s15
      // Predicated region
      $region41: #{tpu_custom_call.1} parent=5 // pred_check
        %p629 = pneg %p628
      $region42: #{tpu_custom_call.1} parent=5 // pred_check_branch
        %631 = sbr.rel (%p629) target = $region44
      $region43: #{tpu_custom_call.1} parent=5 // pred_region
        %s632 = ssub.s32 %s15, 2
        // Predicated region
        $region45: #{tpu_custom_call.1} parent=43 // pred_check
          %p633 = pneg %p110
        $region46: #{tpu_custom_call.1} parent=43 // pred_check_branch
          %635 = sbr.rel (%p633) target = $region48
        $region47: #{tpu_custom_call.1} parent=43 // pred_region
          %s636 = sand.u32 %s95, 1
          %s637 = scalar_lea.sflag [#allocation4], %s636
          %s638 = sand.u32 %s95, 1
          %s639 = smul.addr %s638, 8
          %s640 = scalar_lea.vmem [#allocation7], %s639
          %641 = dma.done %s637, 128
        $region48: #{tpu_custom_call.1} parent=43 // pred_fallthru
          _
      $region44: #{tpu_custom_call.1} parent=5 // pred_fallthru
        _
    $region6: #{tpu_custom_call.1} parent=1 // loop_footer
      %s19 = sadd.s32 1, %s15
    $region7: #{tpu_custom_call.1} parent=1 // loop_footer_branch
      %14 = sbr.rel target = $region3
    $region8: #{tpu_custom_call.1} parent=1 // loop_exit
      _
    %642 = vsyncpa [#allocation3], 1
    %s643 = scalar_lea.sflag [#allocation3], 1
    %644 = vsyncpa %s643, 1
    %645 = vsyncpa [#allocation6], 1
    %646 = vsyncpa [#allocation4], 1
    %s647 = scalar_lea.sflag [#allocation4], 1
    %648 = vsyncpa %s647, 1

</llo_original>
